<compile_context>
chip_gen: v5e
topology: v5e:2x2
jax: 0.10.0
libtpu: 0.0.40
codegen_flags: <defaults>
</compile_context>

<pallas_src>
import jax
import jax.numpy as jnp
from jax import lax
from jax.experimental import pallas as pl
from jax.experimental.pallas import tpu as pltpu

# ---- small, deterministic config (mirrors the PyTorch config fields) ----
N_VOCAB      = 50
EMBED        = 32
NUM_FILTERS  = 8
FILTER_SIZES = (2, 3, 4)
NUM_CLASSES  = 4
BATCH        = 2
SEQ          = 8
# config.dropout exists in __init__ but forward() never applies it -> no dropout.

K_MAX    = max(FILTER_SIZES)                 # 4 conv taps
FDIM     = NUM_FILTERS * len(FILTER_SIZES)   # 24 concatenated feature dim
VPAD     = 64                                # vocab padded to 64 (one-hot lane width)
NROWS    = BATCH * SEQ                       # 16 window rows, 8-aligned per batch
SENTINEL = VPAD - 1                          # out-of-sequence token id -> zero folded row


def textcnn_kernel(tokwin_ref, w2_ref, bconv_ref, mask_ref, fcw_ref, fcb_ref, out_ref):
    tok_win = tokwin_ref[...]                                    # (NROWS, K_MAX) int32
    v_iota = lax.broadcasted_iota(jnp.int32, (NROWS, VPAD), 1)   # (NROWS, VPAD)

    # All conv branches at once: per-tap one-hot selection matmul on the MXU.
    acc = jnp.zeros((NROWS, FDIM), jnp.float32)
    for i in range(K_MAX):                                       # static unroll (4)
        onehot = (tok_win[:, i:i + 1] == v_iota).astype(jnp.float32)    # (NROWS, VPAD)
        acc = acc + jnp.dot(onehot, w2_ref[i], preferred_element_type=jnp.float32)

    # bias + ReLU + validity mask: rows past SEQ-k+1 for the shorter filters are
    # zeroed — safe because post-ReLU values are >= 0, every filter has >= 1 valid
    # row, and all masked values are finite (no stale-VMEM / NaN*0 hazard).
    conv = jnp.maximum(acc + bconv_ref[...], 0.0) * mask_ref[...]       # (NROWS, FDIM)

    # max_pool1d over time: each batch occupies exactly one 8-row sublane tile,
    # so these static slices are tile-aligned reductions.
    pooled = jnp.concatenate(
        [jnp.max(conv[b * SEQ:(b + 1) * SEQ, :], axis=0, keepdims=True)
         for b in range(BATCH)], axis=0)                                # (BATCH, FDIM)

    # Final FC, written straight to the (BATCH, NUM_CLASSES) output.
    out = jnp.dot(pooled, fcw_ref[...], preferred_element_type=jnp.float32) + fcb_ref[...]
    out_ref[...] = out.astype(out_ref.dtype)


def prepare_params(params):
    """One-time parameter re-layout + embedding fold, hoisted off the hot path."""
    emb = params["embedding"].astype(jnp.float32)                 # (N_VOCAB, EMBED)
    emb_pad = jnp.zeros((VPAD, EMBED), jnp.float32).at[:N_VOCAB, :].set(emb)

    w2_taps = []
    for i in range(K_MAX):
        cols = []
        for k in FILTER_SIZES:
            if i < k:
                Wk = params[f"conv{k}_w"][:, 0, i, :]             # (F, E) at tap i
                cols.append(Wk.T.astype(jnp.float32))             # (E, F)
            else:
                cols.append(jnp.zeros((EMBED, NUM_FILTERS), jnp.float32))
        w_tap = jnp.concatenate(cols, axis=1)                     # (E, FDIM)
        # Fold the embedding into the conv weight for this tap: (VPAD, E)@(E, FDIM).
        w2_taps.append(jnp.dot(emb_pad, w_tap, precision=jax.lax.Precision.HIGHEST))
    w2 = jnp.stack(w2_taps, axis=0)                               # (K_MAX, VPAD, FDIM)

    b_conv = jnp.concatenate([params[f"conv{k}_b"] for k in FILTER_SIZES])[None, :]

    # Validity mask: window row l (0..SEQ-1) is valid for filter size k iff
    # l < SEQ - k + 1; identical pattern for every batch's 8-row group.
    l_idx  = jnp.arange(NROWS) % SEQ
    limits = jnp.concatenate([jnp.full((NUM_FILTERS,), SEQ - k + 1, jnp.int32)
                              for k in FILTER_SIZES])             # (FDIM,)
    mask = (l_idx[:, None] < limits[None, :]).astype(jnp.float32)  # (NROWS, FDIM)

    return {
        "w2":     w2,
        "b_conv": b_conv.astype(jnp.float32),
        "mask":   mask,
        "fc_w_t": params["fc_w"].T.astype(jnp.float32),           # (FDIM, C)
        "fc_b":   params["fc_b"][None, :].astype(jnp.float32),    # (1, C)
    }


@jax.jit
def textcnn_forward(tokens, prep):
    # Trivial layout plumbing (fused by XLA): row b*SEQ + l, column i holds
    # tokens[b, l+i]; positions past the sequence end get SENTINEL, whose folded
    # weight rows are all-zero.
    tok_pad = jnp.concatenate(
        [tokens.astype(jnp.int32),
         jnp.full((BATCH, K_MAX - 1), SENTINEL, jnp.int32)], axis=1)      # (B, SEQ+3)
    tok_win = jnp.stack([tok_pad[:, i:i + SEQ] for i in range(K_MAX)],
                        axis=-1).reshape(NROWS, K_MAX)                     # (16, 4)

    vmem = pl.BlockSpec(memory_space=pltpu.MemorySpace.VMEM)
    # NOTE: for large batches, replace this single call with a grid over batch
    # tiles (dimension_semantics=("parallel",)) to amortize dispatch and use both
    # v7x TensorCores; for BATCH=2 a grid-less call is the right shape.
    return pl.pallas_call(
        textcnn_kernel,
        out_shape=jax.ShapeDtypeStruct((BATCH, NUM_CLASSES), jnp.float32),
        in_specs=[vmem] * 6,
        out_specs=vmem,
    )(tok_win, prep["w2"], prep["b_conv"], prep["mask"], prep["fc_w_t"], prep["fc_b"])


def init_params(key):
    ks = jax.random.split(key, 3 + 2 * len(FILTER_SIZES))
    params = {}
    emb_tbl = jax.random.normal(ks[0], (N_VOCAB, EMBED), jnp.float32)
    emb_tbl = emb_tbl.at[N_VOCAB - 1].set(0.0)                    # padding_idx row = 0
    params["embedding"] = emb_tbl
    for idx, k in enumerate(FILTER_SIZES):
        fan_in = k * EMBED
        params[f"conv{k}_w"] = jax.random.normal(
            ks[1 + 2 * idx], (NUM_FILTERS, 1, k, EMBED), jnp.float32) / jnp.sqrt(fan_in)
        params[f"conv{k}_b"] = 0.01 * jax.random.normal(
            ks[2 + 2 * idx], (NUM_FILTERS,), jnp.float32)
    params["fc_w"] = jax.random.normal(
        ks[-2], (NUM_CLASSES, FDIM), jnp.float32) / jnp.sqrt(FDIM)
    params["fc_b"] = 0.01 * jax.random.normal(ks[-1], (NUM_CLASSES,), jnp.float32)
    return params


def reference_forward(tokens, params):
    # Pure-JAX reference reproducing the PyTorch forward semantics
    # (embedding -> per-k conv+ReLU+max-pool -> concat -> fc; dropout unused).
    emb = params["embedding"][tokens]                             # (B, S, E)
    feats = []
    for k in FILTER_SIZES:
        W = params[f"conv{k}_w"][:, 0]                            # (F, k, E)
        b = params[f"conv{k}_b"]
        L = SEQ - k + 1
        acc = jnp.zeros((BATCH, L, NUM_FILTERS), jnp.float32)
        for i in range(k):
            acc = acc + jnp.einsum("ble,fe->blf", emb[:, i:i + L, :], W[:, i, :],
                                   precision=jax.lax.Precision.HIGHEST)
        conv = jax.nn.relu(acc + b[None, None, :])                # (B, L, F)
        feats.append(jnp.max(conv, axis=1))                       # (B, F)
    feat = jnp.concatenate(feats, axis=1)                         # (B, FDIM)
    return jnp.dot(feat, params["fc_w"].T,
                   precision=jax.lax.Precision.HIGHEST) + params["fc_b"]


if __name__ == "__main__":
    key = jax.random.PRNGKey(0)
    pkey, tkey = jax.random.split(key)
    params = init_params(pkey)
    # The PyTorch forward uses x[0] as the token-id tensor; `tokens` plays that role.
    tokens = jax.random.randint(tkey, (BATCH, SEQ), 0, N_VOCAB, dtype=jnp.int32)

    prep = prepare_params(params)                                 # one-time fold/re-layout
    out = textcnn_forward(tokens, prep)
    out = jax.block_until_ready(out)

    ref = reference_forward(tokens, params)
    assert out.shape == (BATCH, NUM_CLASSES)
    # 1e-3 tolerance covers MXU default-precision f32 handling of the tiny FC matmul.
    err = jnp.max(jnp.abs(out - ref))
    assert jnp.allclose(out, ref, atol=1e-3, rtol=1e-3), f"max abs err {err}"
    print("KERNEL_OK")
</pallas_src>

<mosaic_0001>
module attributes {stable_mosaic.version = 11 : i64} {
  func.func @textcnn_kernel(%arg0: memref<16x4xi32, #tpu.memory_space<vmem>>, %arg1: memref<4x64x24xf32, #tpu.memory_space<vmem>>, %arg2: memref<1x24xf32, #tpu.memory_space<vmem>>, %arg3: memref<16x24xf32, #tpu.memory_space<vmem>>, %arg4: memref<24x4xf32, #tpu.memory_space<vmem>>, %arg5: memref<1x4xf32, #tpu.memory_space<vmem>>, %arg6: memref<2x4xf32, #tpu.memory_space<vmem>>) attributes {dimension_semantics = [], scalar_prefetch = 0 : i64, scratch_operands = 0 : i64, tpu.core_type = #tpu.core_type<tc>} {
    %c0 = arith.constant 0 : index
    %c0_0 = arith.constant 0 : index
    %0 = vector.load %arg0[%c0, %c0_0] : memref<16x4xi32, #tpu.memory_space<vmem>>, vector<16x4xi32>
    %1 = tpu.iota {dimensions = array<i32: 1>} : vector<16x64xi32>
    %cst = arith.constant 0.000000e+00 : f32
    %2 = vector.broadcast %cst : f32 to vector<16x24xf32>
    %3 = vector.extract_strided_slice %0 {offsets = [0, 0], sizes = [16, 1], strides = [1, 1]} : vector<16x4xi32> to vector<16x1xi32>
    %4 = vector.broadcast %3 : vector<16x1xi32> to vector<16x64xi32>
    %5 = arith.cmpi eq, %4, %1 : vector<16x64xi32>
    %6 = arith.extui %5 : vector<16x64xi1> to vector<16x64xi32>
    %7 = arith.sitofp %6 : vector<16x64xi32> to vector<16x64xf32>
    %c0_1 = arith.constant 0 : index
    %c0_2 = arith.constant 0 : index
    %c0_3 = arith.constant 0 : index
    %8 = vector.load %arg1[%c0_1, %c0_2, %c0_3] : memref<4x64x24xf32, #tpu.memory_space<vmem>>, vector<1x64x24xf32>
    %9 = vector.shape_cast %8 : vector<1x64x24xf32> to vector<64x24xf32>
    %cst_4 = arith.constant dense<0.000000e+00> : vector<16x24xf32>
    %10 = tpu.matmul %7, %9, %cst_4 {dimension_numbers = #tpu.dot_dimension_numbers<[1], [0], [0], [1], [0, 0, 1, 1], [], []>} : vector<16x64xf32>, vector<64x24xf32>, vector<16x24xf32> -> vector<16x24xf32>
    %11 = arith.addf %2, %10 : vector<16x24xf32>
    %12 = vector.extract_strided_slice %0 {offsets = [0, 1], sizes = [16, 1], strides = [1, 1]} : vector<16x4xi32> to vector<16x1xi32>
    %13 = vector.broadcast %12 : vector<16x1xi32> to vector<16x64xi32>
    %14 = arith.cmpi eq, %13, %1 : vector<16x64xi32>
    %15 = arith.extui %14 : vector<16x64xi1> to vector<16x64xi32>
    %16 = arith.sitofp %15 : vector<16x64xi32> to vector<16x64xf32>
    %c1 = arith.constant 1 : index
    %c0_5 = arith.constant 0 : index
    %c0_6 = arith.constant 0 : index
    %17 = vector.load %arg1[%c1, %c0_5, %c0_6] : memref<4x64x24xf32, #tpu.memory_space<vmem>>, vector<1x64x24xf32>
    %18 = vector.shape_cast %17 : vector<1x64x24xf32> to vector<64x24xf32>
    %cst_7 = arith.constant dense<0.000000e+00> : vector<16x24xf32>
    %19 = tpu.matmul %16, %18, %cst_7 {dimension_numbers = #tpu.dot_dimension_numbers<[1], [0], [0], [1], [0, 0, 1, 1], [], []>} : vector<16x64xf32>, vector<64x24xf32>, vector<16x24xf32> -> vector<16x24xf32>
    %20 = arith.addf %11, %19 : vector<16x24xf32>
    %21 = vector.extract_strided_slice %0 {offsets = [0, 2], sizes = [16, 1], strides = [1, 1]} : vector<16x4xi32> to vector<16x1xi32>
    %22 = vector.broadcast %21 : vector<16x1xi32> to vector<16x64xi32>
    %23 = arith.cmpi eq, %22, %1 : vector<16x64xi32>
    %24 = arith.extui %23 : vector<16x64xi1> to vector<16x64xi32>
    %25 = arith.sitofp %24 : vector<16x64xi32> to vector<16x64xf32>
    %c2 = arith.constant 2 : index
    %c0_8 = arith.constant 0 : index
    %c0_9 = arith.constant 0 : index
    %26 = vector.load %arg1[%c2, %c0_8, %c0_9] : memref<4x64x24xf32, #tpu.memory_space<vmem>>, vector<1x64x24xf32>
    %27 = vector.shape_cast %26 : vector<1x64x24xf32> to vector<64x24xf32>
    %cst_10 = arith.constant dense<0.000000e+00> : vector<16x24xf32>
    %28 = tpu.matmul %25, %27, %cst_10 {dimension_numbers = #tpu.dot_dimension_numbers<[1], [0], [0], [1], [0, 0, 1, 1], [], []>} : vector<16x64xf32>, vector<64x24xf32>, vector<16x24xf32> -> vector<16x24xf32>
    %29 = arith.addf %20, %28 : vector<16x24xf32>
    %30 = vector.extract_strided_slice %0 {offsets = [0, 3], sizes = [16, 1], strides = [1, 1]} : vector<16x4xi32> to vector<16x1xi32>
    %31 = vector.broadcast %30 : vector<16x1xi32> to vector<16x64xi32>
    %32 = arith.cmpi eq, %31, %1 : vector<16x64xi32>
    %33 = arith.extui %32 : vector<16x64xi1> to vector<16x64xi32>
    %34 = arith.sitofp %33 : vector<16x64xi32> to vector<16x64xf32>
    %c3 = arith.constant 3 : index
    %c0_11 = arith.constant 0 : index
    %c0_12 = arith.constant 0 : index
    %35 = vector.load %arg1[%c3, %c0_11, %c0_12] : memref<4x64x24xf32, #tpu.memory_space<vmem>>, vector<1x64x24xf32>
    %36 = vector.shape_cast %35 : vector<1x64x24xf32> to vector<64x24xf32>
    %cst_13 = arith.constant dense<0.000000e+00> : vector<16x24xf32>
    %37 = tpu.matmul %34, %36, %cst_13 {dimension_numbers = #tpu.dot_dimension_numbers<[1], [0], [0], [1], [0, 0, 1, 1], [], []>} : vector<16x64xf32>, vector<64x24xf32>, vector<16x24xf32> -> vector<16x24xf32>
    %38 = arith.addf %29, %37 : vector<16x24xf32>
    %c0_14 = arith.constant 0 : index
    %c0_15 = arith.constant 0 : index
    %39 = vector.load %arg2[%c0_14, %c0_15] : memref<1x24xf32, #tpu.memory_space<vmem>>, vector<1x24xf32>
    %40 = vector.broadcast %39 : vector<1x24xf32> to vector<16x24xf32>
    %41 = arith.addf %38, %40 : vector<16x24xf32>
    %cst_16 = arith.constant 0.000000e+00 : f32
    %42 = vector.broadcast %cst_16 : f32 to vector<16x24xf32>
    %43 = arith.maximumf %41, %42 : vector<16x24xf32>
    %c0_17 = arith.constant 0 : index
    %c0_18 = arith.constant 0 : index
    %44 = vector.load %arg3[%c0_17, %c0_18] : memref<16x24xf32, #tpu.memory_space<vmem>>, vector<16x24xf32>
    %45 = arith.mulf %43, %44 : vector<16x24xf32>
    %46 = vector.extract_strided_slice %45 {offsets = [0, 0], sizes = [8, 24], strides = [1, 1]} : vector<16x24xf32> to vector<8x24xf32>
    %cst_19 = arith.constant dense<0xFF800000> : vector<24xf32>
    %47 = vector.multi_reduction <maximumf>, %46, %cst_19 [0] : vector<8x24xf32> to vector<24xf32>
    %48 = vector.shape_cast %47 : vector<24xf32> to vector<1x24xf32>
    %49 = vector.extract_strided_slice %45 {offsets = [8, 0], sizes = [8, 24], strides = [1, 1]} : vector<16x24xf32> to vector<8x24xf32>
    %cst_20 = arith.constant dense<0xFF800000> : vector<24xf32>
    %50 = vector.multi_reduction <maximumf>, %49, %cst_20 [0] : vector<8x24xf32> to vector<24xf32>
    %51 = vector.shape_cast %50 : vector<24xf32> to vector<1x24xf32>
    %52 = tpu.concatenate %48, %51 in 0 : vector<1x24xf32>, vector<1x24xf32> -> vector<2x24xf32>
    %c0_21 = arith.constant 0 : index
    %c0_22 = arith.constant 0 : index
    %53 = vector.load %arg4[%c0_21, %c0_22] : memref<24x4xf32, #tpu.memory_space<vmem>>, vector<24x4xf32>
    %cst_23 = arith.constant dense<0.000000e+00> : vector<2x4xf32>
    %54 = tpu.matmul %52, %53, %cst_23 {dimension_numbers = #tpu.dot_dimension_numbers<[1], [0], [0], [1], [0, 0, 1, 1], [], []>} : vector<2x24xf32>, vector<24x4xf32>, vector<2x4xf32> -> vector<2x4xf32>
    %c0_24 = arith.constant 0 : index
    %c0_25 = arith.constant 0 : index
    %55 = vector.load %arg5[%c0_24, %c0_25] : memref<1x4xf32, #tpu.memory_space<vmem>>, vector<1x4xf32>
    %56 = vector.broadcast %55 : vector<1x4xf32> to vector<2x4xf32>
    %57 = arith.addf %54, %56 : vector<2x4xf32>
    %c0_26 = arith.constant 0 : index
    %c0_27 = arith.constant 0 : index
    %58 = vector.load %arg6[%c0_26, %c0_27] : memref<2x4xf32, #tpu.memory_space<vmem>>, vector<2x4xf32>
    tpu.vector_store %arg6[%c0_26, %c0_27], %57 {strides = array<i32>} : memref<2x4xf32, #tpu.memory_space<vmem>>, vector<2x4xf32>,
    return
  }
}

</mosaic_0001>

<llo_original>
// kernel: textcnn_forward.1
$region0: #{textcnn_forward.1}
  #allocation0 [shape = 'u32[]', space=smem, size = 0x4, offset = 0x4, fixed_abs, tag = 'smem constant byte address 0x4 - core index']
  #allocation1 [shape = 'u32[72,128]{1,0:T(1,128)}', space=vmem, size = 0x9000, scoped, tag = 'internal scratch']
  %s0 = inlined_call_operand.vmem [shape: s32[16,4], index: 0, kind: input, shape index: {}]
  %s1 = inlined_call_operand.vmem [shape: f32[4,64,24], index: 1, kind: input, shape index: {}]
  %s2 = inlined_call_operand.vmem [shape: f32[1,24], index: 2, kind: input, shape index: {}]
  %s3 = inlined_call_operand.vmem [shape: f32[16,24], index: 3, kind: input, shape index: {}]
  %s4 = inlined_call_operand.vmem [shape: f32[24,4], index: 4, kind: input, shape index: {}]
  %s5 = inlined_call_operand.vmem [shape: f32[1,4], index: 5, kind: input, shape index: {}]
  %s6 = inlined_call_operand.hbm [shape: f32[2,4], index: 6, kind: output, shape index: {}]
  %s7 = sld [smem:[#allocation0]]
  $region34: #{textcnn_forward.1} parent=0
    _
  %s9 = ssub.s32 1, %s7
  %s10 = scalar_select 0, %s9, %s7
  $region1: #{textcnn_forward.1} parent=0
    #allocation2 [shape = 'u8[1024]{0}', space=vmem, size = 0x400, scoped, tag = 'output window, operand 0, single buffered']
    #allocation3 [shape = 's32[1]{0}', space=sflag, size = 0x4, scoped, tag = 'scoped memory for textcnn_forward.1']
    %11 = vsyncpa [#allocation3], 0
    // Predicated region
    $region2: #{textcnn_forward.1} parent=1 // pred_check
      _
    $region3: #{textcnn_forward.1} parent=1 // pred_check_branch
      %13 = sbr.rel (0) target = $region5
    $region4: #{textcnn_forward.1} parent=1 // pred_region
      _
    $region5: #{textcnn_forward.1} parent=1 // pred_fallthru
      _
    // Predicated region
    $region6: #{textcnn_forward.1} parent=1 // pred_check
      _
    $region7: #{textcnn_forward.1} parent=1 // pred_check_branch
      %15 = sbr.rel (0) target = $region9
    $region8: #{textcnn_forward.1} parent=1 // pred_region
      _
    $region9: #{textcnn_forward.1} parent=1 // pred_fallthru
      _
    // Predicated region
    $region10: #{textcnn_forward.1} parent=1 // pred_check
      _
    $region11: #{textcnn_forward.1} parent=1 // pred_check_branch
      %17 = sbr.rel (0) target = $region13
    $region12: #{textcnn_forward.1} parent=1 // pred_region
      _
    $region13: #{textcnn_forward.1} parent=1 // pred_fallthru
      _
    // Predicated region
    $region14: #{textcnn_forward.1} parent=1 // pred_check
      _
    $region15: #{textcnn_forward.1} parent=1 // pred_check_branch
      %19 = sbr.rel (0) target = $region17
    $region16: #{textcnn_forward.1} parent=1 // pred_region
      _
    $region17: #{textcnn_forward.1} parent=1 // pred_fallthru
      _
    // Predicated region
    $region18: #{textcnn_forward.1} parent=1 // pred_check
      _
    $region19: #{textcnn_forward.1} parent=1 // pred_check_branch
      %21 = sbr.rel (0) target = $region21
    $region20: #{textcnn_forward.1} parent=1 // pred_region
      _
    $region21: #{textcnn_forward.1} parent=1 // pred_fallthru
      _
    // Predicated region
    $region22: #{textcnn_forward.1} parent=1 // pred_check
      _
    $region23: #{textcnn_forward.1} parent=1 // pred_check_branch
      %23 = sbr.rel (0) target = $region25
    $region24: #{textcnn_forward.1} parent=1 // pred_region
      _
    $region25: #{textcnn_forward.1} parent=1 // pred_fallthru
      _
    %v24 = vld [vmem:[%s0] sm:$0xff]
    %v25 = vld [vmem:[%s0 + $0x8] sm:$0xff]
    %v26 = vlaneseq
    %v27 = vand.u32 %v26, 127
    %28 = vset.pattern.permute.xlu0 0
    %29 = vperm.xlu0 %28, %v24
    %v30 = vpop.permute.xlu0 %29
    %31 = vset.pattern.permute.xlu0 0
    %32 = vperm.xlu0 %31, %v25
    %v33 = vpop.permute.xlu0 %32
    %vm34 = vcmp.eq.s32.totalorder %v30, %v27
    %vm35 = vcmp.eq.s32.totalorder %v33, %v27
    %v36 = vsel %vm34, 1, 0
    %v37 = vsel %vm35, 1, 0
    %v38 = vcvt.s32.f32 %v36
    %v39 = vcvt.s32.f32 %v37
    %v40 = vld [vmem:[%s1] sm:$0xff]
    %v41 = vld [vmem:[%s1 + $0x8] sm:$0xff]
    %v42 = vld [vmem:[%s1 + $0x10] sm:$0xff]
    %v43 = vld [vmem:[%s1 + $0x18] sm:$0xff]
    %v44 = vld [vmem:[%s1 + $0x20] sm:$0xff]
    %v45 = vld [vmem:[%s1 + $0x28] sm:$0xff]
    %v46 = vld [vmem:[%s1 + $0x30] sm:$0xff]
    %v47 = vld [vmem:[%s1 + $0x38] sm:$0xff]
    %48 = vset.pattern.permute.xlu0 1
    %49 = vperm.xlu0 %48, %v24
    %v50 = vpop.permute.xlu0 %49
    %51 = vset.pattern.permute.xlu0 1
    %52 = vperm.xlu0 %51, %v25
    %v53 = vpop.permute.xlu0 %52
    %vm54 = vcmp.eq.s32.totalorder %v50, %v27
    %vm55 = vcmp.eq.s32.totalorder %v53, %v27
    %v56 = vsel %vm54, 1, 0
    %v57 = vsel %vm55, 1, 0
    %v58 = vcvt.s32.f32 %v56
    %v59 = vcvt.s32.f32 %v57
    %s60 = scalar_lea.vmem %s1, 64
    %v61 = vld [vmem:[%s60] sm:$0xff]
    %v62 = vld [vmem:[%s60 + $0x8] sm:$0xff]
    %v63 = vld [vmem:[%s60 + $0x10] sm:$0xff]
    %v64 = vld [vmem:[%s60 + $0x18] sm:$0xff]
    %v65 = vld [vmem:[%s60 + $0x20] sm:$0xff]
    %v66 = vld [vmem:[%s60 + $0x28] sm:$0xff]
    %v67 = vld [vmem:[%s60 + $0x30] sm:$0xff]
    %v68 = vld [vmem:[%s60 + $0x38] sm:$0xff]
    %vm69 = vcmask 523264
    %v71 = vsel %vm69, %v58, 0
    %v74 = vsel %vm69, %v59, 0
    %76 = vmatpush.msra.mxu0 0.0
    %77 = vmatpush.msra.mxu0 0.0
    %78 = vmatpush.msra.mxu0 0.0
    %79 = vmatpush.msra.mxu0 0.0
    %80 = vmatpush.msra.mxu0 0.0
    %81 = vmatpush.msra.mxu0 0.0
    %82 = vmatpush.msra.mxu0 0.0
    %83 = vmatpush.msra.mxu0 0.0
    %84 = vmatpush.msra.mxu0 %v68
    %85 = vmatpush.msra.mxu0 %v67
    %86 = vmatpush.msra.mxu0 %v66
    %87 = vmatpush.msra.mxu0 %v65
    %88 = vmatpush.msra.mxu0 %v64
    %89 = vmatpush.msra.mxu0 %v63
    %90 = vmatpush.msra.mxu0 %v62
    %91 = vmatpush.msra.mxu0 %v61
    %92 = vmatmul.f32.gmra.mxu0 %v71
    %v93 = vpop.f32.mrf.mxu0
    %v94 = vadd.f32 0.0, %v93
    %95 = vmatmul.f32.gmra.mxu0 %v74
    %v96 = vpop.f32.mrf.mxu0
    %v97 = vadd.f32 0.0, %v96
    %98 = vdwg.mxu0
    %v100 = vsel %vm69, %v38, 0
    %v103 = vsel %vm69, %v39, 0
    %105 = vmatpush.msra.mxu0 0.0
    %106 = vmatpush.msra.mxu0 0.0
    %107 = vmatpush.msra.mxu0 0.0
    %108 = vmatpush.msra.mxu0 0.0
    %109 = vmatpush.msra.mxu0 0.0
    %110 = vmatpush.msra.mxu0 0.0
    %111 = vmatpush.msra.mxu0 0.0
    %112 = vmatpush.msra.mxu0 0.0
    %113 = vmatpush.msra.mxu0 %v47
    %114 = vmatpush.msra.mxu0 %v46
    %115 = vmatpush.msra.mxu0 %v45
    %116 = vmatpush.msra.mxu0 %v44
    %117 = vmatpush.msra.mxu0 %v43
    %118 = vmatpush.msra.mxu0 %v42
    %119 = vmatpush.msra.mxu0 %v41
    %120 = vmatpush.msra.mxu0 %v40
    %121 = vmatmul.f32.gmra.mxu0 %v100
    %v122 = vpop.f32.mrf.mxu0
    %v123 = vadd.f32 %v94, %v122
    %124 = vmatmul.f32.gmra.mxu0 %v103
    %v125 = vpop.f32.mrf.mxu0
    %v126 = vadd.f32 %v97, %v125
    %127 = vdwg.mxu0
    %128 = vset.pattern.permute.xlu0 2
    %129 = vperm.xlu0 %128, %v24
    %v130 = vpop.permute.xlu0 %129
    %131 = vset.pattern.permute.xlu0 2
    %132 = vperm.xlu0 %131, %v25
    %v133 = vpop.permute.xlu0 %132
    %vm134 = vcmp.eq.s32.totalorder %v130, %v27
    %vm135 = vcmp.eq.s32.totalorder %v133, %v27
    %v136 = vsel %vm134, 1, 0
    %v137 = vsel %vm135, 1, 0
    %v138 = vcvt.s32.f32 %v136
    %v139 = vcvt.s32.f32 %v137
    %s140 = scalar_lea.vmem %s1, 128
    %v141 = vld [vmem:[%s140] sm:$0xff]
    %v142 = vld [vmem:[%s140 + $0x8] sm:$0xff]
    %v143 = vld [vmem:[%s140 + $0x10] sm:$0xff]
    %v144 = vld [vmem:[%s140 + $0x18] sm:$0xff]
    %v145 = vld [vmem:[%s140 + $0x20] sm:$0xff]
    %v146 = vld [vmem:[%s140 + $0x28] sm:$0xff]
    %v147 = vld [vmem:[%s140 + $0x30] sm:$0xff]
    %v148 = vld [vmem:[%s140 + $0x38] sm:$0xff]
    %v150 = vsel %vm69, %v138, 0
    %v153 = vsel %vm69, %v139, 0
    %155 = vmatpush.msra.mxu0 0.0
    %156 = vmatpush.msra.mxu0 0.0
    %157 = vmatpush.msra.mxu0 0.0
    %158 = vmatpush.msra.mxu0 0.0
    %159 = vmatpush.msra.mxu0 0.0
    %160 = vmatpush.msra.mxu0 0.0
    %161 = vmatpush.msra.mxu0 0.0
    %162 = vmatpush.msra.mxu0 0.0
    %163 = vmatpush.msra.mxu0 %v148
    %164 = vmatpush.msra.mxu0 %v147
    %165 = vmatpush.msra.mxu0 %v146
    %166 = vmatpush.msra.mxu0 %v145
    %167 = vmatpush.msra.mxu0 %v144
    %168 = vmatpush.msra.mxu0 %v143
    %169 = vmatpush.msra.mxu0 %v142
    %170 = vmatpush.msra.mxu0 %v141
    %171 = vmatmul.f32.gmra.mxu0 %v150
    %v172 = vpop.f32.mrf.mxu0
    %v173 = vadd.f32 0.0, %v172
    %174 = vmatmul.f32.gmra.mxu0 %v153
    %v175 = vpop.f32.mrf.mxu0
    %v176 = vadd.f32 0.0, %v175
    %177 = vdwg.mxu0
    %v178 = vadd.f32 %v123, %v173
    %v179 = vadd.f32 %v126, %v176
    %180 = vset.pattern.permute.xlu0 3
    %181 = vperm.xlu0 %180, %v24
    %v182 = vpop.permute.xlu0 %181
    %183 = vset.pattern.permute.xlu0 3
    %184 = vperm.xlu0 %183, %v25
    %v185 = vpop.permute.xlu0 %184
    %vm186 = vcmp.eq.s32.totalorder %v182, %v27
    %vm187 = vcmp.eq.s32.totalorder %v185, %v27
    %v188 = vsel %vm186, 1, 0
    %v189 = vsel %vm187, 1, 0
    %v190 = vcvt.s32.f32 %v188
    %v191 = vcvt.s32.f32 %v189
    %s192 = scalar_lea.vmem %s1, 192
    %v193 = vld [vmem:[%s192] sm:$0xff]
    %v194 = vld [vmem:[%s192 + $0x8] sm:$0xff]
    %v195 = vld [vmem:[%s192 + $0x10] sm:$0xff]
    %v196 = vld [vmem:[%s192 + $0x18] sm:$0xff]
    %v197 = vld [vmem:[%s192 + $0x20] sm:$0xff]
    %v198 = vld [vmem:[%s192 + $0x28] sm:$0xff]
    %v199 = vld [vmem:[%s192 + $0x30] sm:$0xff]
    %v200 = vld [vmem:[%s192 + $0x38] sm:$0xff]
    %v202 = vsel %vm69, %v190, 0
    %v205 = vsel %vm69, %v191, 0
    %207 = vmatpush.msra.mxu0 0.0
    %208 = vmatpush.msra.mxu0 0.0
    %209 = vmatpush.msra.mxu0 0.0
    %210 = vmatpush.msra.mxu0 0.0
    %211 = vmatpush.msra.mxu0 0.0
    %212 = vmatpush.msra.mxu0 0.0
    %213 = vmatpush.msra.mxu0 0.0
    %214 = vmatpush.msra.mxu0 0.0
    %215 = vmatpush.msra.mxu0 %v200
    %216 = vmatpush.msra.mxu0 %v199
    %217 = vmatpush.msra.mxu0 %v198
    %218 = vmatpush.msra.mxu0 %v197
    %219 = vmatpush.msra.mxu0 %v196
    %220 = vmatpush.msra.mxu0 %v195
    %221 = vmatpush.msra.mxu0 %v194
    %222 = vmatpush.msra.mxu0 %v193
    %223 = vmatmul.f32.gmra.mxu0 %v202
    %v224 = vpop.f32.mrf.mxu0
    %v225 = vadd.f32 0.0, %v224
    %226 = vmatmul.f32.gmra.mxu0 %v205
    %v227 = vpop.f32.mrf.mxu0
    %v228 = vadd.f32 0.0, %v227
    %229 = vdwg.mxu0
    %v230 = vadd.f32 %v178, %v225
    %v231 = vadd.f32 %v179, %v228
    %v232 = vld [vmem:[%s2] sm:$0x1]
    %v234 = vperm.slane %v232, 0
    %v236 = vadd.f32 %v230, %v234
    %v237 = vadd.f32 %v231, %v234
    %v238 = vmax.f32 %v236, 0.0
    %v239 = vmax.f32 %v237, 0.0
    %v240 = vld [vmem:[%s3] sm:$0xff]
    %v241 = vld [vmem:[%s3 + $0x8] sm:$0xff]
    %v242 = vmul.f32 %v238, %v240
    %v243 = vmul.f32 %v239, %v241
    %vm244 = vcmask 195584
    %v245 = vsel %vm244, %v242, -inf
    %v246 = vrot.slane %v245, 4
    %v247 = vmax.f32 %v245, %v246
    %v248 = vrot.slane %v247, 2
    %v249 = vmax.f32 %v247, %v248
    %v250 = vrot.slane %v249, 1
    %v251 = vmax.f32 %v249, %v250
    %v252 = vsel %vm244, %v243, -inf
    %v253 = vrot.slane %v252, 4
    %v254 = vmax.f32 %v252, %v253
    %v255 = vrot.slane %v254, 2
    %v256 = vmax.f32 %v254, %v255
    %v257 = vrot.slane %v256, 1
    %v258 = vmax.f32 %v256, %v257
    %vm259 = vcmask 1040384
    %v260 = vsel %vm259, %v251, %v258
    %v261 = vld [vmem:[%s4] sm:$0xff]
    %v262 = vld [vmem:[%s4 + $0x8] sm:$0xff]
    %v263 = vld [vmem:[%s4 + $0x10] sm:$0xff]
    %v264 = vld [vmem:[%s5] sm:$0x1]
    %v266 = vperm.slane %v264, 0
    %v269 = vsel %vm244, %v260, 0
    %271 = vmatpush.msra.mxu0 0.0
    %272 = vmatpush.msra.mxu0 0.0
    %273 = vmatpush.msra.mxu0 0.0
    %274 = vmatpush.msra.mxu0 0.0
    %275 = vmatpush.msra.mxu0 0.0
    %276 = vmatpush.msra.mxu0 0.0
    %277 = vmatpush.msra.mxu0 0.0
    %278 = vmatpush.msra.mxu0 0.0
    %279 = vmatpush.msra.mxu0 0.0
    %280 = vmatpush.msra.mxu0 0.0
    %281 = vmatpush.msra.mxu0 0.0
    %282 = vmatpush.msra.mxu0 0.0
    %283 = vmatpush.msra.mxu0 0.0
    %284 = vmatpush.msra.mxu0 %v263
    %285 = vmatpush.msra.mxu0 %v262
    %286 = vmatpush.msra.mxu0 %v261
    %287 = vmatmul.f32.gmra.mxu0 %v269
    %v288 = vpop.f32.mrf.mxu0
    %v289 = vadd.f32 %v266, %v288
    %290 = vdwg.mxu0
    %vm291 = vcmask 25600
    %292 = vst.msk [vmem:[#allocation2] sm:$0x3] %vm291, %v289
    // Predicated region
    $region26: #{textcnn_forward.1} parent=1 // pred_check
      _
    $region27: #{textcnn_forward.1} parent=1 // pred_check_branch
      %294 = sbr.rel (0) target = $region29
    $region28: #{textcnn_forward.1} parent=1 // pred_region
      %296 = vsyncadd [#allocation3], 0
      %s298 = sshll.u32 [#allocation2], 4
      %s299 = int_to_ptr.vmem [resolvable:$true] %s298
      %s300 = sshll.u32 %s6, 4
      %s301 = int_to_ptr.hbm [resolvable:$true] %s300
      %303 = dma.vmem_to_hbm [thread:$0]  %s299, 32, %s301, [#allocation3]
    $region29: #{textcnn_forward.1} parent=1 // pred_fallthru
      _
    // Predicated region
    $region30: #{textcnn_forward.1} parent=1 // pred_check
      _
    $region31: #{textcnn_forward.1} parent=1 // pred_check_branch
      %305 = sbr.rel (0) target = $region33
    $region32: #{textcnn_forward.1} parent=1 // pred_region
      %307 = dma.done [#allocation3], 32
    $region33: #{textcnn_forward.1} parent=1 // pred_fallthru
      _
    %308 = vsyncpa [#allocation3], 1

</llo_original>
